<compile_context>
chip_gen: v7x
topology: tpu7x:2x2x1
jax: 0.10.0
libtpu: 0.0.40
codegen_flags: <defaults>
</compile_context>

<pallas_src>
import math

import jax
import jax.numpy as jnp
from jax.experimental import pallas as pl
from jax.experimental.pallas import tpu as pltpu


def make_positional_encoding(d_model: int, max_len: int = 21) -> jnp.ndarray:
    """Builds the sinusoidal table, shape (max_len, 1, d_model), float32."""
    position = jnp.arange(0, max_len, dtype=jnp.float32)[:, None]            # (L, 1)
    div_term = jnp.exp(
        jnp.arange(0, d_model, 2, dtype=jnp.float32)
        * (-math.log(10000.0) / d_model)
    )                                                                         # (ceil(D/2),)
    pe = jnp.zeros((max_len, d_model), dtype=jnp.float32)
    pe = pe.at[:, 0::2].set(jnp.sin(position * div_term))
    if d_model % 2 == 0:
        pe = pe.at[:, 1::2].set(jnp.cos(position * div_term))
    else:
        pe = pe.at[:, 1::2].set(jnp.cos(position * div_term[:-1]))
    # unsqueeze(0).transpose(0, 1) -> (max_len, 1, d_model)
    return pe[:, None, :]


def _pos_enc_kernel(x_ref, pe_ref, o_ref):
    # x_ref/o_ref: (S, tc) blocks of the lane-dense 2D view; pe_ref: the
    # matching (S, tc) pe slab (resident, constant block index).
    # Compute the add in f32 (matches torch's dtype promotion), cast on store.
    x = x_ref[...].astype(jnp.float32)
    p = pe_ref[...].astype(jnp.float32)
    o_ref[...] = (x + p).astype(o_ref.dtype)


def _round_up(n: int, m: int) -> int:
    return -(-n // m) * m


def _choose_col_tile(n_cols_padded: int, n_rows: int, itemsize: int,
                     target_bytes: int = 4 << 20) -> int:
    """Pick a lane-dense column tile (~target_bytes per x block) dividing n_cols_padded."""
    assert n_cols_padded % 128 == 0
    max_tc = max(128, (target_bytes // max(1, n_rows * itemsize)) // 128 * 128)
    tc = min(n_cols_padded, max_tc)
    while n_cols_padded % tc != 0:
        tc -= 128
    # v7x megacore: make sure a large single-block grid gets >= 2 steps so the
    # "parallel" axis can shard across both TensorCores.  No-op on v5e/v6e and
    # for small inputs.
    block_bytes = n_rows * tc * itemsize
    if tc == n_cols_padded and n_cols_padded >= 256 and block_bytes >= (1 << 20):
        tc = max(128, (n_cols_padded // 2) // 128 * 128)
        while n_cols_padded % tc != 0:
            tc -= 128
    return tc


def positional_encoding_forward(x: jnp.ndarray, pe: jnp.ndarray,
                                *, force_pallas: bool = False) -> jnp.ndarray:
    """x: (S, B, D); pe: (max_len, 1, D) float32. Returns x + pe[:S] (broadcast over B)."""
    S, B, D = x.shape
    assert pe.shape[0] >= S and pe.shape[2] == D

    out_dtype = jnp.result_type(x.dtype, pe.dtype)   # torch-style promotion

    # Small-input fast path: kernel dispatch overhead dwarfs a tiny fused add.
    total_bytes = S * B * D * jnp.dtype(out_dtype).itemsize
    if not force_pallas and total_bytes < (512 << 10):
        return (x + pe[:S]).astype(out_dtype)

    n_cols = B * D
    n_cols_padded = _round_up(n_cols, 128)

    # Lane-dense 2D view: row s of x2 is [x[s,0,:], ..., x[s,B-1,:]]; pad the
    # flattened column axis to a 128 multiple so every store is full-width.
    x2 = x.reshape(S, n_cols)
    if n_cols_padded != n_cols:
        x2 = jnp.pad(x2, ((0, 0), (0, n_cols_padded - n_cols)))

    tc = _choose_col_tile(n_cols_padded, S, jnp.dtype(x.dtype).itemsize)
    grid = (n_cols_padded // tc,)

    pe_row = pe[:S, 0, :]                            # (S, D), float32, tiny

    if tc % D == 0:
        # Single resident pe block: each column block starts on a batch
        # boundary, so the same (S, tc) pe slab is valid for every block.
        # Constant block index => Pallas keeps it in VMEM, no re-DMA.
        pe2 = jnp.tile(pe_row, (1, tc // D))         # (S, tc)
        pe_spec = pl.BlockSpec((S, tc), lambda j: (0, 0))
    else:
        # Fallback (D does not divide the tile): full-width pe, per-block DMA.
        pe2 = jnp.tile(pe_row, (1, B))               # (S, B*D)
        if n_cols_padded != n_cols:
            pe2 = jnp.pad(pe2, ((0, 0), (0, n_cols_padded - n_cols)))
        pe_spec = pl.BlockSpec((S, tc), lambda j: (0, j))

    # VMEM budget: x + out double-buffered, pe resident (+ its buffers), plus
    # headroom.  Clamp so it fits v7x's 64 MiB physical VMEM per TensorCore.
    block_bytes = S * tc * (jnp.dtype(x.dtype).itemsize
                            + jnp.dtype(out_dtype).itemsize
                            + jnp.dtype(pe2.dtype).itemsize)
    vmem_limit = int(min(56 << 20, max(16 << 20, 2 * block_bytes + (2 << 20))))

    out2 = pl.pallas_call(
        _pos_enc_kernel,
        out_shape=jax.ShapeDtypeStruct((S, n_cols_padded), out_dtype),
        grid_spec=pltpu.PrefetchScalarGridSpec(
            num_scalar_prefetch=0,
            grid=grid,
            in_specs=[
                pl.BlockSpec((S, tc), lambda j: (0, j)),   # x block
                pe_spec,                                   # pe block (resident)
            ],
            out_specs=pl.BlockSpec((S, tc), lambda j: (0, j)),
        ),
        compiler_params=pltpu.CompilerParams(
            dimension_semantics=("parallel",),
            vmem_limit_bytes=vmem_limit,
        ),
    )(x2, pe2)

    if n_cols_padded != n_cols:
        out2 = out2[:, :n_cols]
    return out2.reshape(S, B, D)


def reference_forward(x: jnp.ndarray, pe: jnp.ndarray) -> jnp.ndarray:
    return x + pe[: x.shape[0], :]


if __name__ == "__main__":
    max_len = 21
    key = jax.random.PRNGKey(0)

    # Case 1: module's toy shape (S=8, B=2, D=32) -> B*D=64, exercises the
    # pad-to-128 path.  force_pallas=True so the kernel actually runs.
    S, B, D = 8, 2, 32
    k1, k2 = jax.random.split(key)
    x1 = jax.random.normal(k1, (S, B, D), dtype=jnp.float32)
    pe = make_positional_encoding(D, max_len)

    out1 = jax.block_until_ready(positional_encoding_forward(x1, pe, force_pallas=True))
    ref1 = reference_forward(x1, pe)
    assert out1.shape == (S, B, D)
    assert jnp.allclose(out1, ref1, atol=1e-6, rtol=1e-6)

    # Also check the default (fast-path) wrapper gives the same result.
    out1_fast = jax.block_until_ready(positional_encoding_forward(x1, pe))
    assert jnp.allclose(out1_fast, ref1, atol=1e-6, rtol=1e-6)

    # Case 2: B*D exactly 128 (no padding), still small.
    S2, B2, D2 = 8, 4, 32
    x2 = jax.random.normal(k2, (S2, B2, D2), dtype=jnp.float32)
    out2 = jax.block_until_ready(positional_encoding_forward(x2, pe, force_pallas=True))
    ref2 = reference_forward(x2, pe)
    assert out2.shape == (S2, B2, D2)
    assert jnp.allclose(out2, ref2, atol=1e-6, rtol=1e-6)

    print("KERNEL_OK")
</pallas_src>

<mosaic_0001>
module attributes {stable_mosaic.version = 11 : i64} {
  func.func @_pos_enc_kernel(%arg0: i32, %arg1: memref<8x128xf32, #tpu.memory_space<vmem>>, %arg2: memref<8x128xf32, #tpu.memory_space<vmem>>, %arg3: memref<8x128xf32, #tpu.memory_space<vmem>>) attributes {dimension_semantics = [#tpu.dimension_semantics<parallel>], iteration_bounds = array<i64: 1>, scalar_prefetch = 0 : i64, scratch_operands = 0 : i64, tpu.core_type = #tpu.core_type<tc>, window_params = [{transform_indices = @transform_0, window_bounds = array<i64: 8, 128>}, {pipeline_mode = #tpu.pipeline_mode<synchronous>, transform_indices = @transform_1, window_bounds = array<i64: 8, 128>}, {transform_indices = @transform_2, window_bounds = array<i64: 8, 128>}]} {
    %c0 = arith.constant 0 : index
    %c0_0 = arith.constant 0 : index
    %0 = vector.load %arg1[%c0, %c0_0] : memref<8x128xf32, #tpu.memory_space<vmem>>, vector<8x128xf32>
    %c0_1 = arith.constant 0 : index
    %c0_2 = arith.constant 0 : index
    %1 = vector.load %arg2[%c0_1, %c0_2] : memref<8x128xf32, #tpu.memory_space<vmem>>, vector<8x128xf32>
    %2 = arith.addf %0, %1 : vector<8x128xf32>
    %c0_3 = arith.constant 0 : index
    %c0_4 = arith.constant 0 : index
    %3 = vector.load %arg3[%c0_3, %c0_4] : memref<8x128xf32, #tpu.memory_space<vmem>>, vector<8x128xf32>
    tpu.vector_store %arg3[%c0_3, %c0_4], %2 {strides = array<i32>} : memref<8x128xf32, #tpu.memory_space<vmem>>, vector<8x128xf32>,
    return
  }
  func.func @transform_0(%arg0: i32) -> (i32, i32) {
    %c0_i32 = arith.constant 0 : i32
    %c0_i32_0 = arith.constant 0 : i32
    return %c0_i32, %arg0 : i32, i32
  }
  func.func @transform_1(%arg0: i32) -> (i32, i32) {
    %c0_i32 = arith.constant 0 : i32
    %c0_i32_0 = arith.constant 0 : i32
    %c0_i32_1 = arith.constant 0 : i32
    return %c0_i32, %c0_i32_0 : i32, i32
  }
  func.func @transform_2(%arg0: i32) -> (i32, i32) {
    %c0_i32 = arith.constant 0 : i32
    %c0_i32_0 = arith.constant 0 : i32
    return %c0_i32, %arg0 : i32, i32
  }
}

</mosaic_0001>

<llo_original>
// kernel: tpu_custom_call.1
$region0: #{tpu_custom_call.1}
  #allocation0 [shape = 'u32[]', space=smem, size = 0x4, offset = 0x4, fixed_abs, tag = 'smem constant byte address 0x4 - core index']
  #allocation1 [shape = 'u32[144,128]{1,0:T(1,128)}', space=vmem, size = 0x12000, scoped, tag = 'internal scratch']
  %s0 = inlined_call_operand.hbm [shape: f32[8,128], index: 0, kind: input, shape index: {}]
  %s1 = inlined_call_operand.hbm [shape: f32[8,128], index: 1, kind: input, shape index: {}]
  %s2 = inlined_call_operand.hbm [shape: f32[8,128], index: 2, kind: output, shape index: {}]
  %s3 = sld [smem:[#allocation0]]
  $region26: #{tpu_custom_call.1} parent=0
    _
  %s5 = ssub.s32 1, %s3
  %s6 = scalar_select 0, %s5, %s3
  $region1: #{tpu_custom_call.1} parent=0
    #allocation2 [shape = 'u8[4096]{0}', space=vmem, size = 0x1000, scoped, tag = 'input window, operand 0, single buffered']
    #allocation3 [shape = 's32[1]{0}', space=sflag, size = 0x4, scoped, tag = 'scoped memory for tpu_custom_call.1']
    #allocation4 [shape = 's32[1]{0}', space=sflag, size = 0x4, scoped, tag = 'scoped memory for tpu_custom_call.1']
    #allocation5 [shape = 'u8[4096]{0}', space=vmem, size = 0x1000, scoped, tag = 'input window, operand 1, single buffered']
    #allocation6 [shape = 's32[1]{0}', space=sflag, size = 0x4, scoped, tag = 'scoped memory for tpu_custom_call.1']
    #allocation7 [shape = 'u8[4096]{0}', space=vmem, size = 0x1000, scoped, tag = 'output window, operand 0, single buffered']
    %7 = vsyncpa [#allocation3], 0
    %8 = vsyncpa [#allocation6], 0
    %9 = vsyncpa [#allocation4], 0
    // Predicated region
    $region2: #{tpu_custom_call.1} parent=1 // pred_check
      _
    $region3: #{tpu_custom_call.1} parent=1 // pred_check_branch
      %11 = sbr.rel (0) target = $region5
    $region4: #{tpu_custom_call.1} parent=1 // pred_region
      %s13 = ssub.s32 128, 128
      %14 = vsyncadd [#allocation3], %s13
      %s16 = sshll.u32 [#allocation2], 4
      %s17 = int_to_ptr.vmem [resolvable:$true] %s16
      %19 = dma.hbm_to_vmem [thread:$0]  %s0, 128, %s17, [#allocation3]
    $region5: #{tpu_custom_call.1} parent=1 // pred_fallthru
      _
    // Predicated region
    $region6: #{tpu_custom_call.1} parent=1 // pred_check
      _
    $region7: #{tpu_custom_call.1} parent=1 // pred_check_branch
      %21 = sbr.rel (0) target = $region9
    $region8: #{tpu_custom_call.1} parent=1 // pred_region
      %s23 = ssub.s32 128, 128
      %24 = vsyncadd [#allocation6], %s23
      %s26 = sshll.u32 [#allocation5], 4
      %s27 = int_to_ptr.vmem [resolvable:$true] %s26
      %29 = dma.hbm_to_vmem [thread:$0]  %s1, 128, %s27, [#allocation6]
    $region9: #{tpu_custom_call.1} parent=1 // pred_fallthru
      _
    // Predicated region
    $region10: #{tpu_custom_call.1} parent=1 // pred_check
      _
    $region11: #{tpu_custom_call.1} parent=1 // pred_check_branch
      %31 = sbr.rel (0) target = $region13
    $region12: #{tpu_custom_call.1} parent=1 // pred_region
      %32 = dma.done [#allocation3], 128
    $region13: #{tpu_custom_call.1} parent=1 // pred_fallthru
      _
    // Predicated region
    $region14: #{tpu_custom_call.1} parent=1 // pred_check
      _
    $region15: #{tpu_custom_call.1} parent=1 // pred_check_branch
      %34 = sbr.rel (0) target = $region17
    $region16: #{tpu_custom_call.1} parent=1 // pred_region
      %35 = dma.done [#allocation6], 128
    $region17: #{tpu_custom_call.1} parent=1 // pred_fallthru
      _
    %v36 = vld [vmem:[#allocation2] sm:$0xff]
    %v37 = vld [vmem:[#allocation5] sm:$0xff]
    %v38 = vadd.f32 %v36, %v37
    %39 = vst [vmem:[#allocation7] sm:$0xff] %v38
    // Predicated region
    $region18: #{tpu_custom_call.1} parent=1 // pred_check
      _
    $region19: #{tpu_custom_call.1} parent=1 // pred_check_branch
      %41 = sbr.rel (0) target = $region21
    $region20: #{tpu_custom_call.1} parent=1 // pred_region
      %s43 = ssub.s32 128, 128
      %44 = vsyncadd [#allocation4], %s43
      %s46 = sshll.u32 [#allocation7], 4
      %s47 = int_to_ptr.vmem [resolvable:$true] %s46
      %49 = dma.vmem_to_hbm [thread:$0]  %s47, 128, %s2, [#allocation4]
    $region21: #{tpu_custom_call.1} parent=1 // pred_fallthru
      _
    // Predicated region
    $region22: #{tpu_custom_call.1} parent=1 // pred_check
      _
    $region23: #{tpu_custom_call.1} parent=1 // pred_check_branch
      %51 = sbr.rel (0) target = $region25
    $region24: #{tpu_custom_call.1} parent=1 // pred_region
      %52 = dma.done [#allocation4], 128
    $region25: #{tpu_custom_call.1} parent=1 // pred_fallthru
      _
    %53 = vsyncpa [#allocation3], 1
    %54 = vsyncpa [#allocation6], 1
    %55 = vsyncpa [#allocation4], 1

</llo_original>
